<compile_context>
chip_gen: v7x
topology: tpu7x:2x2x1
jax: 0.10.0
libtpu: 0.0.40
codegen_flags: <defaults>
</compile_context>

<pallas_src>
import functools

import jax
import jax.numpy as jnp
from jax.experimental import pallas as pl
from jax.experimental.pallas import tpu as pltpu

_HP = jax.lax.Precision.HIGHEST


def _inference_kernel(x_ref, w1t_ref, b1_ref, w23t_ref, b23_ref, out_ref):
    # x_ref:    (8, B)   features on sublanes (row 7 is zero pad), batch on lanes
    # w1t_ref:  (H, 8)   fc1 weights, transposed + zero-padded column
    # b1_ref:   (H, 1)
    # w23t_ref: (4, H)   fused [fc2 | fc3] weights, transposed
    # b23_ref:  (4, 1)
    # out_ref:  (4, B)   rows 0..1 = mu, rows 2..3 = softplus pre-activation
    h = jnp.dot(w1t_ref[...], x_ref[...], precision=_HP,
                preferred_element_type=jnp.float32) + b1_ref[...]      # (H, B)
    h = jnp.maximum(h, 0.0)

    y = jnp.dot(w23t_ref[...], h, precision=_HP,
                preferred_element_type=jnp.float32) + b23_ref[...]     # (4, B)

    # Numerically-stable softplus applied only to the fc3 rows (sublane mask).
    n_out = out_ref.shape[0] // 2
    row = jax.lax.broadcasted_iota(jnp.int32, y.shape, dimension=0)
    softplus_y = jnp.maximum(y, 0.0) + jnp.log1p(jnp.exp(-jnp.abs(y)))
    out_ref[...] = jnp.where(row >= n_out, softplus_y, y)


def fuse_params(params):
    """One-time (init-time) repack: transpose + pad fc1, fuse fc2/fc3 heads."""
    W1, b1, W2, b2, W3, b3 = params
    H = W1.shape[1]
    W1t = jnp.concatenate((W1.T, jnp.zeros((H, 1), W1.dtype)), axis=1)  # (H, 8)
    b1t = b1.reshape(H, 1)                                              # (H, 1)
    W23t = jnp.concatenate((W2, W3), axis=1).T                          # (4, H)
    b23t = jnp.concatenate((b2, b3), axis=1).reshape(-1, 1)             # (4, 1)
    return W1t, b1t, W23t, b23t


def _pack_inputs(r, w0, w1, mx, my, sx, sy):
    """Stack the seven (B,1) features into one (8, B) feature-major slab."""
    feats = jnp.concatenate((r, w0, w1, mx, my, sx, sy), axis=1)        # (B, 7)
    pad = jnp.zeros((feats.shape[0], 1), feats.dtype)
    return jnp.concatenate((feats, pad), axis=1).T                      # (8, B)


def inference_net_forward(r, w0, w1, mx, my, sx, sy, fused_params, *,
                          num_blocks=1):
    """Forward pass.  num_blocks=1 -> single no-grid call (default; correct
    choice up to batches of many thousands).  num_blocks=2 -> lane-tiled grid,
    one tile per TensorCore on v7x for genuinely large, memory-bound batches."""
    W1t, b1t, W23t, b23t = fused_params
    x = _pack_inputs(r, w0, w1, mx, my, sx, sy)                         # (8, B)
    B = x.shape[1]
    O2 = W23t.shape[0]
    out_shape = jax.ShapeDtypeStruct((O2, B), jnp.float32)
    args = (x, W1t, b1t, W23t, b23t)

    if num_blocks <= 1:
        vmem = functools.partial(pl.BlockSpec,
                                 memory_space=pltpu.MemorySpace.VMEM)
        out = pl.pallas_call(
            _inference_kernel,
            in_specs=[vmem() for _ in args],
            out_specs=vmem(),
            out_shape=out_shape,
        )(*args)
    else:
        assert B % num_blocks == 0, "num_blocks must divide batch"
        tb = B // num_blocks
        assert tb % 128 == 0, "lane tile must be a multiple of 128"

        def resident(shape):               # weights/biases fetched once
            return pl.BlockSpec(shape, lambda i: (0, 0))

        out = pl.pallas_call(
            _inference_kernel,
            grid=(num_blocks,),
            in_specs=[
                pl.BlockSpec((8, tb), lambda i: (0, i)),
                resident(W1t.shape), resident(b1t.shape),
                resident(W23t.shape), resident(b23t.shape),
            ],
            out_specs=pl.BlockSpec((O2, tb), lambda i: (0, i)),
            out_shape=out_shape,
            compiler_params=pltpu.CompilerParams(
                dimension_semantics=("parallel",)),
        )(*args)

    n_out = O2 // 2
    return out[:n_out, :].T, out[n_out:, :].T          # mu (B,2), sd (B,2)


def init_params(key, n_in=7, n_hidden=32, n_out=2):
    """Deterministic PyTorch-style init: U(-1/sqrt(fan_in), 1/sqrt(fan_in))."""
    ks = jax.random.split(key, 6)

    def lin(kw, kb, fan_in, fan_out):
        bound = 1.0 / jnp.sqrt(float(fan_in))
        W = jax.random.uniform(kw, (fan_in, fan_out), jnp.float32, -bound, bound)
        b = jax.random.uniform(kb, (1, fan_out), jnp.float32, -bound, bound)
        return W, b

    W1, b1 = lin(ks[0], ks[1], n_in, n_hidden)
    W2, b2 = lin(ks[2], ks[3], n_hidden, n_out)
    W3, b3 = lin(ks[4], ks[5], n_hidden, n_out)
    return (W1, b1, W2, b2, W3, b3)


if __name__ == "__main__":
    key = jax.random.PRNGKey(0)
    k_param, k_small, k_big = jax.random.split(key, 3)

    n_hidden = 32
    params = init_params(k_param, n_in=7, n_hidden=n_hidden, n_out=2)
    fused = fuse_params(params)
    W1, b1, W2, b2, W3, b3 = params

    def reference(inputs):
        x = jnp.concatenate(inputs, axis=1)
        h = jnp.maximum(jnp.dot(x, W1, precision=_HP) + b1, 0.0)
        mu = jnp.dot(h, W2, precision=_HP) + b2
        sd = jax.nn.softplus(jnp.dot(h, W3, precision=_HP) + b3)
        return mu, sd

    def check(mu, sd, inputs, tag):
        mu_ref, sd_ref = reference(inputs)
        assert mu.shape == mu_ref.shape and sd.shape == sd_ref.shape
        assert jnp.allclose(mu, mu_ref, atol=1e-4), f"{tag}: mean mismatch"
        assert jnp.allclose(sd, sd_ref, atol=1e-4), f"{tag}: softplus mismatch"

    # --- small batch: single no-grid call -----------------------------------
    B_small = 8
    ks = jax.random.split(k_small, 7)
    small_inputs = [jax.random.normal(k, (B_small, 1), jnp.float32) for k in ks]
    mu, sd = inference_net_forward(*small_inputs, fused)
    jax.block_until_ready((mu, sd))
    check(mu, sd, small_inputs, "small")

    # --- larger batch, still no grid (per review: grid overhead > traffic) --
    B_big = 512
    kb = jax.random.split(k_big, 7)
    big_inputs = [jax.random.normal(k, (B_big, 1), jnp.float32) for k in kb]
    mu_b, sd_b = inference_net_forward(*big_inputs, fused)
    jax.block_until_ready((mu_b, sd_b))
    check(mu_b, sd_b, big_inputs, "big-nogrid")

    # --- optional 2-step lane-tiled grid (one tile per v7x TensorCore) ------
    mu_g, sd_g = inference_net_forward(*big_inputs, fused, num_blocks=2)
    jax.block_until_ready((mu_g, sd_g))
    check(mu_g, sd_g, big_inputs, "big-2tile")

    print("KERNEL_OK")
</pallas_src>

<mosaic_0001>
module attributes {stable_mosaic.version = 11 : i64} {
  func.func @_inference_kernel(%arg0: memref<8x8xf32, #tpu.memory_space<vmem>>, %arg1: memref<32x8xf32, #tpu.memory_space<vmem>>, %arg2: memref<32x1xf32, #tpu.memory_space<vmem>>, %arg3: memref<4x32xf32, #tpu.memory_space<vmem>>, %arg4: memref<4x1xf32, #tpu.memory_space<vmem>>, %arg5: memref<4x8xf32, #tpu.memory_space<vmem>>) attributes {dimension_semantics = [], scalar_prefetch = 0 : i64, scratch_operands = 0 : i64, tpu.core_type = #tpu.core_type<tc>} {
    %c0 = arith.constant 0 : index
    %c0_0 = arith.constant 0 : index
    %0 = vector.load %arg1[%c0, %c0_0] : memref<32x8xf32, #tpu.memory_space<vmem>>, vector<32x8xf32>
    %c0_1 = arith.constant 0 : index
    %c0_2 = arith.constant 0 : index
    %1 = vector.load %arg0[%c0_1, %c0_2] : memref<8x8xf32, #tpu.memory_space<vmem>>, vector<8x8xf32>
    %cst = arith.constant dense<0.000000e+00> : vector<32x8xf32>
    %2 = tpu.matmul %0, %1, %cst {dimension_numbers = #tpu.dot_dimension_numbers<[1], [0], [0], [1], [0, 0, 1, 1], [], []>, precision = #tpu.contract_precision<fp32>} : vector<32x8xf32>, vector<8x8xf32>, vector<32x8xf32> -> vector<32x8xf32>
    %c0_3 = arith.constant 0 : index
    %c0_4 = arith.constant 0 : index
    %3 = vector.load %arg2[%c0_3, %c0_4] : memref<32x1xf32, #tpu.memory_space<vmem>>, vector<32x1xf32>
    %4 = vector.broadcast %3 : vector<32x1xf32> to vector<32x8xf32>
    %5 = arith.addf %2, %4 : vector<32x8xf32>
    %cst_5 = arith.constant 0.000000e+00 : f32
    %6 = vector.broadcast %cst_5 : f32 to vector<32x8xf32>
    %7 = arith.maximumf %5, %6 : vector<32x8xf32>
    %c0_6 = arith.constant 0 : index
    %c0_7 = arith.constant 0 : index
    %8 = vector.load %arg3[%c0_6, %c0_7] : memref<4x32xf32, #tpu.memory_space<vmem>>, vector<4x32xf32>
    %cst_8 = arith.constant dense<0.000000e+00> : vector<4x8xf32>
    %9 = tpu.matmul %8, %7, %cst_8 {dimension_numbers = #tpu.dot_dimension_numbers<[1], [0], [0], [1], [0, 0, 1, 1], [], []>, precision = #tpu.contract_precision<fp32>} : vector<4x32xf32>, vector<32x8xf32>, vector<4x8xf32> -> vector<4x8xf32>
    %c0_9 = arith.constant 0 : index
    %c0_10 = arith.constant 0 : index
    %10 = vector.load %arg4[%c0_9, %c0_10] : memref<4x1xf32, #tpu.memory_space<vmem>>, vector<4x1xf32>
    %11 = vector.broadcast %10 : vector<4x1xf32> to vector<4x8xf32>
    %12 = arith.addf %9, %11 : vector<4x8xf32>
    %13 = tpu.iota {dimensions = array<i32: 0>} : vector<4x8xi32>
    %cst_11 = arith.constant 0.000000e+00 : f32
    %14 = vector.broadcast %cst_11 : f32 to vector<4x8xf32>
    %15 = arith.maximumf %12, %14 : vector<4x8xf32>
    %16 = math.absf %12 : vector<4x8xf32>
    %cst_12 = arith.constant 0.000000e+00 : f32
    %17 = vector.broadcast %cst_12 : f32 to vector<4x8xf32>
    %18 = arith.subf %17, %16 : vector<4x8xf32>
    %19 = math.exp %18 : vector<4x8xf32>
    %20 = math.log1p %19 : vector<4x8xf32>
    %21 = arith.addf %15, %20 : vector<4x8xf32>
    %c2_i32 = arith.constant 2 : i32
    %22 = vector.broadcast %c2_i32 : i32 to vector<4x8xi32>
    %23 = arith.cmpi sge, %13, %22 : vector<4x8xi32>
    %24 = arith.select %23, %21, %12 : vector<4x8xi1>, vector<4x8xf32>
    %c0_13 = arith.constant 0 : index
    %c0_14 = arith.constant 0 : index
    %25 = vector.load %arg5[%c0_13, %c0_14] : memref<4x8xf32, #tpu.memory_space<vmem>>, vector<4x8xf32>
    tpu.vector_store %arg5[%c0_13, %c0_14], %24 {strides = array<i32>} : memref<4x8xf32, #tpu.memory_space<vmem>>, vector<4x8xf32>,
    return
  }
}

</mosaic_0001>

<llo_original>
// kernel: tpu_custom_call.1
$region0: #{tpu_custom_call.1}
  #allocation0 [shape = 'u32[]', space=smem, size = 0x4, offset = 0x4, fixed_abs, tag = 'smem constant byte address 0x4 - core index']
  #allocation1 [shape = 'u32[144,128]{1,0:T(1,128)}', space=vmem, size = 0x12000, scoped, tag = 'internal scratch']
  %s0 = inlined_call_operand.vmem [shape: f32[8,8], index: 0, kind: input, shape index: {}]
  %s1 = inlined_call_operand.vmem [shape: f32[32,8], index: 1, kind: input, shape index: {}]
  %s2 = inlined_call_operand.vmem [shape: f32[32,1], index: 2, kind: input, shape index: {}]
  %s3 = inlined_call_operand.vmem [shape: f32[4,32], index: 3, kind: input, shape index: {}]
  %s4 = inlined_call_operand.vmem [shape: f32[4,1], index: 4, kind: input, shape index: {}]
  %s5 = inlined_call_operand.hbm [shape: f32[4,8], index: 5, kind: output, shape index: {}]
  %s6 = sld [smem:[#allocation0]]
  $region30: #{tpu_custom_call.1} parent=0
    _
  %s8 = ssub.s32 1, %s6
  %s9 = scalar_select 0, %s8, %s6
  $region1: #{tpu_custom_call.1} parent=0
    #allocation2 [shape = 'u8[2048]{0}', space=vmem, size = 0x800, scoped, tag = 'output window, operand 0, single buffered']
    #allocation3 [shape = 's32[1]{0}', space=sflag, size = 0x4, scoped, tag = 'scoped memory for tpu_custom_call.1']
    %10 = vsyncpa [#allocation3], 0
    // Predicated region
    $region2: #{tpu_custom_call.1} parent=1 // pred_check
      _
    $region3: #{tpu_custom_call.1} parent=1 // pred_check_branch
      %12 = sbr.rel (0) target = $region5
    $region4: #{tpu_custom_call.1} parent=1 // pred_region
      _
    $region5: #{tpu_custom_call.1} parent=1 // pred_fallthru
      _
    // Predicated region
    $region6: #{tpu_custom_call.1} parent=1 // pred_check
      _
    $region7: #{tpu_custom_call.1} parent=1 // pred_check_branch
      %14 = sbr.rel (0) target = $region9
    $region8: #{tpu_custom_call.1} parent=1 // pred_region
      _
    $region9: #{tpu_custom_call.1} parent=1 // pred_fallthru
      _
    // Predicated region
    $region10: #{tpu_custom_call.1} parent=1 // pred_check
      _
    $region11: #{tpu_custom_call.1} parent=1 // pred_check_branch
      %16 = sbr.rel (0) target = $region13
    $region12: #{tpu_custom_call.1} parent=1 // pred_region
      _
    $region13: #{tpu_custom_call.1} parent=1 // pred_fallthru
      _
    // Predicated region
    $region14: #{tpu_custom_call.1} parent=1 // pred_check
      _
    $region15: #{tpu_custom_call.1} parent=1 // pred_check_branch
      %18 = sbr.rel (0) target = $region17
    $region16: #{tpu_custom_call.1} parent=1 // pred_region
      _
    $region17: #{tpu_custom_call.1} parent=1 // pred_fallthru
      _
    // Predicated region
    $region18: #{tpu_custom_call.1} parent=1 // pred_check
      _
    $region19: #{tpu_custom_call.1} parent=1 // pred_check_branch
      %20 = sbr.rel (0) target = $region21
    $region20: #{tpu_custom_call.1} parent=1 // pred_region
      _
    $region21: #{tpu_custom_call.1} parent=1 // pred_fallthru
      _
    %v21 = vld [vmem:[%s1] sm:$0xff]
    %v22 = vld [vmem:[%s1 + $0x8] sm:$0xff]
    %v23 = vld [vmem:[%s1 + $0x10] sm:$0xff]
    %v24 = vld [vmem:[%s1 + $0x18] sm:$0xff]
    %v25 = vld [vmem:[%s0] sm:$0xff]
    %v26 = vld [vmem:[%s2] sm:$0xff]
    %v27 = vld [vmem:[%s2 + $0x8] sm:$0xff]
    %v28 = vld [vmem:[%s2 + $0x10] sm:$0xff]
    %v29 = vld [vmem:[%s2 + $0x18] sm:$0xff]
    %31 = vset.pattern.permute.xlu0 0
    %32 = vperm.xlu0 %31, %v26
    %v33 = vpop.permute.xlu0 %32
    %36 = vset.pattern.permute.xlu0 0
    %37 = vperm.xlu0 %36, %v27
    %v38 = vpop.permute.xlu0 %37
    %41 = vset.pattern.permute.xlu0 0
    %42 = vperm.xlu0 %41, %v28
    %v43 = vpop.permute.xlu0 %42
    %46 = vset.pattern.permute.xlu0 0
    %47 = vperm.xlu0 %46, %v29
    %v48 = vpop.permute.xlu0 %47
    %vm50 = vcmask 64512
    %v52 = vsel %vm50, %v21, 0
    %v55 = vsel %vm50, %v22, 0
    %v58 = vsel %vm50, %v23, 0
    %v61 = vsel %vm50, %v24, 0
    %63 = vmatprep.subr.mxu0 0.0
    %v64 = vand.u32 %v25, 4294901760
    %65 = vmatpush1.msra.mxu0 %v64
    %66 = vmatprep.subr.mxu0 0.0
    %67 = vmatpush1.msra.mxu0 0.0
    %68 = vmatprep.subr.mxu0 0.0
    %69 = vmatpush1.msra.mxu0 0.0
    %70 = vmatprep.subr.mxu0 0.0
    %71 = vmatpush1.msra.mxu0 0.0
    %72 = vmatprep.subr.mxu0 0.0
    %73 = vmatpush1.msra.mxu0 0.0
    %74 = vmatprep.subr.mxu0 0.0
    %75 = vmatpush1.msra.mxu0 0.0
    %76 = vmatprep.subr.mxu0 0.0
    %77 = vmatpush1.msra.mxu0 0.0
    %78 = vmatprep.subr.mxu0 0.0
    %79 = vmatpush1.msra.mxu0 0.0
    %80 = vmatprep.subr.mxu0 0.0
    %81 = vmatpush1.msra.mxu0 0.0
    %82 = vmatprep.subr.mxu0 0.0
    %83 = vmatpush1.msra.mxu0 0.0
    %84 = vmatprep.subr.mxu0 0.0
    %85 = vmatpush1.msra.mxu0 0.0
    %86 = vmatprep.subr.mxu0 0.0
    %87 = vmatpush1.msra.mxu0 0.0
    %88 = vmatprep.subr.mxu0 0.0
    %89 = vmatpush1.msra.mxu0 0.0
    %90 = vmatprep.subr.mxu0 0.0
    %91 = vmatpush1.msra.mxu0 0.0
    %92 = vmatprep.subr.mxu0 0.0
    %93 = vmatpush1.msra.mxu0 0.0
    %94 = vmatprep.subr.mxu0 0.0
    %95 = vmatpush1.msra.mxu0 0.0
    %96 = vmatprep.subr.mxu0 0.0
    %97 = vmatpush1.msra.mxu0 0.0
    %98 = vmatprep.subr.mxu0 0.0
    %99 = vmatpush1.msra.mxu0 0.0
    %100 = vmatprep.subr.mxu0 0.0
    %101 = vmatpush1.msra.mxu0 0.0
    %102 = vmatprep.subr.mxu0 0.0
    %103 = vmatpush1.msra.mxu0 0.0
    %104 = vmatprep.subr.mxu0 0.0
    %105 = vmatpush1.msra.mxu0 0.0
    %106 = vmatprep.subr.mxu0 0.0
    %107 = vmatpush1.msra.mxu0 0.0
    %108 = vmatprep.subr.mxu0 0.0
    %109 = vmatpush1.msra.mxu0 0.0
    %110 = vmatprep.subr.mxu0 0.0
    %111 = vmatpush1.msra.mxu0 0.0
    %112 = vmatprep.subr.mxu0 0.0
    %113 = vmatpush1.msra.mxu0 0.0
    %114 = vmatprep.subr.mxu0 0.0
    %115 = vmatpush1.msra.mxu0 0.0
    %116 = vmatprep.subr.mxu0 0.0
    %117 = vmatpush1.msra.mxu0 0.0
    %118 = vmatprep.subr.mxu0 0.0
    %119 = vmatpush1.msra.mxu0 0.0
    %120 = vmatprep.subr.mxu0 0.0
    %121 = vmatpush1.msra.mxu0 0.0
    %122 = vmatprep.subr.mxu0 0.0
    %123 = vmatpush1.msra.mxu0 0.0
    %124 = vmatprep.subr.mxu0 0.0
    %125 = vmatpush1.msra.mxu0 0.0
    %126 = vmatprep.subr.mxu0 0.0
    %127 = vmatpush1.msra.mxu0 0.0
    %128 = vmatprep.mubr.f32.mxu0 0.0
    %v129 = vand.u32 %v52, 4294901760
    %v130 = vsub.f32 %v52, %v129
    %v131 = vand.u32 %v130, 4294901760
    %v132 = vsub.f32 %v130, %v131
    %v133 = vand.u32 %v132, 4294901760
    %134 = vmatmul.mubr.f32.gmra.mrb[0].mxu0 %v133
    %v135 = vpop.f32.mrb[0].mxu0
    %v136 = vadd.f32 %v33, %v135
    %v137 = vpop.f32.mrb[0].mxu0
    %138 = vmatprep.mubr.f32.mxu0 0.0
    %v139 = vand.u32 %v55, 4294901760
    %v140 = vsub.f32 %v55, %v139
    %v141 = vand.u32 %v140, 4294901760
    %v142 = vsub.f32 %v140, %v141
    %v143 = vand.u32 %v142, 4294901760
    %144 = vmatmul.mubr.f32.gmra.mrb[0].mxu0 %v143
    %v145 = vpop.f32.mrb[0].mxu0
    %v146 = vadd.f32 %v38, %v145
    %v147 = vpop.f32.mrb[0].mxu0
    %148 = vmatprep.mubr.f32.mxu0 0.0
    %v149 = vand.u32 %v58, 4294901760
    %v150 = vsub.f32 %v58, %v149
    %v151 = vand.u32 %v150, 4294901760
    %v152 = vsub.f32 %v150, %v151
    %v153 = vand.u32 %v152, 4294901760
    %154 = vmatmul.mubr.f32.gmra.mrb[0].mxu0 %v153
    %v155 = vpop.f32.mrb[0].mxu0
    %v156 = vadd.f32 %v43, %v155
    %v157 = vpop.f32.mrb[0].mxu0
    %158 = vmatprep.mubr.f32.mxu0 0.0
    %v159 = vand.u32 %v61, 4294901760
    %v160 = vsub.f32 %v61, %v159
    %v161 = vand.u32 %v160, 4294901760
    %v162 = vsub.f32 %v160, %v161
    %v163 = vand.u32 %v162, 4294901760
    %164 = vmatmul.mubr.f32.gmra.mrb[0].mxu0 %v163
    %v165 = vpop.f32.mrb[0].mxu0
    %v166 = vadd.f32 %v48, %v165
    %v167 = vpop.f32.mrb[0].mxu0
    %168 = vdwg.mxu0
    %169 = vmatprep.subr.mxu0 0.0
    %v170 = vand.u32 %v25, 4294901760
    %v171 = vsub.f32 %v25, %v170
    %v172 = vand.u32 %v171, 4294901760
    %v173 = vsub.f32 %v171, %v172
    %v174 = vand.u32 %v173, 4294901760
    %175 = vmatpush1.msra.mxu0 %v174
    %176 = vmatprep.subr.mxu0 0.0
    %177 = vmatpush1.msra.mxu0 0.0
    %178 = vmatprep.subr.mxu0 0.0
    %179 = vmatpush1.msra.mxu0 0.0
    %180 = vmatprep.subr.mxu0 0.0
    %181 = vmatpush1.msra.mxu0 0.0
    %182 = vmatprep.subr.mxu0 0.0
    %183 = vmatpush1.msra.mxu0 0.0
    %184 = vmatprep.subr.mxu0 0.0
    %185 = vmatpush1.msra.mxu0 0.0
    %186 = vmatprep.subr.mxu0 0.0
    %187 = vmatpush1.msra.mxu0 0.0
    %188 = vmatprep.subr.mxu0 0.0
    %189 = vmatpush1.msra.mxu0 0.0
    %190 = vmatprep.subr.mxu0 0.0
    %191 = vmatpush1.msra.mxu0 0.0
    %192 = vmatprep.subr.mxu0 0.0
    %193 = vmatpush1.msra.mxu0 0.0
    %194 = vmatprep.subr.mxu0 0.0
    %195 = vmatpush1.msra.mxu0 0.0
    %196 = vmatprep.subr.mxu0 0.0
    %197 = vmatpush1.msra.mxu0 0.0
    %198 = vmatprep.subr.mxu0 0.0
    %199 = vmatpush1.msra.mxu0 0.0
    %200 = vmatprep.subr.mxu0 0.0
    %201 = vmatpush1.msra.mxu0 0.0
    %202 = vmatprep.subr.mxu0 0.0
    %203 = vmatpush1.msra.mxu0 0.0
    %204 = vmatprep.subr.mxu0 0.0
    %205 = vmatpush1.msra.mxu0 0.0
    %206 = vmatprep.subr.mxu0 0.0
    %207 = vmatpush1.msra.mxu0 0.0
    %208 = vmatprep.subr.mxu0 0.0
    %209 = vmatpush1.msra.mxu0 0.0
    %210 = vmatprep.subr.mxu0 0.0
    %211 = vmatpush1.msra.mxu0 0.0
    %212 = vmatprep.subr.mxu0 0.0
    %213 = vmatpush1.msra.mxu0 0.0
    %214 = vmatprep.subr.mxu0 0.0
    %215 = vmatpush1.msra.mxu0 0.0
    %216 = vmatprep.subr.mxu0 0.0
    %217 = vmatpush1.msra.mxu0 0.0
    %218 = vmatprep.subr.mxu0 0.0
    %219 = vmatpush1.msra.mxu0 0.0
    %220 = vmatprep.subr.mxu0 0.0
    %221 = vmatpush1.msra.mxu0 0.0
    %222 = vmatprep.subr.mxu0 0.0
    %223 = vmatpush1.msra.mxu0 0.0
    %224 = vmatprep.subr.mxu0 0.0
    %225 = vmatpush1.msra.mxu0 0.0
    %226 = vmatprep.subr.mxu0 0.0
    %227 = vmatpush1.msra.mxu0 0.0
    %228 = vmatprep.subr.mxu0 0.0
    %229 = vmatpush1.msra.mxu0 0.0
    %230 = vmatprep.subr.mxu0 0.0
    %231 = vmatpush1.msra.mxu0 0.0
    %232 = vmatprep.subr.mxu0 0.0
    %233 = vmatpush1.msra.mxu0 0.0
    %234 = vmatprep.subr.mxu0 0.0
    %235 = vmatpush1.msra.mxu0 0.0
    %236 = vmatprep.subr.mxu0 0.0
    %237 = vmatpush1.msra.mxu0 0.0
    %238 = vmatprep.mubr.f32.mxu0 0.0
    %v239 = vand.u32 %v52, 4294901760
    %240 = vmatmul.mubr.f32.gmra.mrb[0].mxu0 %v239
    %v241 = vpop.f32.mrb[0].mxu0
    %v242 = vadd.f32 %v136, %v241
    %v243 = vpop.f32.mrb[0].mxu0
    %244 = vmatprep.mubr.f32.mxu0 0.0
    %v245 = vand.u32 %v55, 4294901760
    %246 = vmatmul.mubr.f32.gmra.mrb[0].mxu0 %v245
    %v247 = vpop.f32.mrb[0].mxu0
    %v248 = vadd.f32 %v146, %v247
    %v249 = vpop.f32.mrb[0].mxu0
    %250 = vmatprep.mubr.f32.mxu0 0.0
    %v251 = vand.u32 %v58, 4294901760
    %252 = vmatmul.mubr.f32.gmra.mrb[0].mxu0 %v251
    %v253 = vpop.f32.mrb[0].mxu0
    %v254 = vadd.f32 %v156, %v253
    %v255 = vpop.f32.mrb[0].mxu0
    %256 = vmatprep.mubr.f32.mxu0 0.0
    %v257 = vand.u32 %v61, 4294901760
    %258 = vmatmul.mubr.f32.gmra.mrb[0].mxu0 %v257
    %v259 = vpop.f32.mrb[0].mxu0
    %v260 = vadd.f32 %v166, %v259
    %v261 = vpop.f32.mrb[0].mxu0
    %262 = vdwg.mxu0
    %263 = vmatprep.subr.mxu0 0.0
    %v264 = vand.u32 %v25, 4294901760
    %v265 = vsub.f32 %v25, %v264
    %266 = vmatpush1.msra.mxu0 %v265
    %267 = vmatprep.subr.mxu0 0.0
    %268 = vmatpush1.msra.mxu0 0.0
    %269 = vmatprep.subr.mxu0 0.0
    %270 = vmatpush1.msra.mxu0 0.0
    %271 = vmatprep.subr.mxu0 0.0
    %272 = vmatpush1.msra.mxu0 0.0
    %273 = vmatprep.subr.mxu0 0.0
    %274 = vmatpush1.msra.mxu0 0.0
    %275 = vmatprep.subr.mxu0 0.0
    %276 = vmatpush1.msra.mxu0 0.0
    %277 = vmatprep.subr.mxu0 0.0
    %278 = vmatpush1.msra.mxu0 0.0
    %279 = vmatprep.subr.mxu0 0.0
    %280 = vmatpush1.msra.mxu0 0.0
    %281 = vmatprep.subr.mxu0 0.0
    %282 = vmatpush1.msra.mxu0 0.0
    %283 = vmatprep.subr.mxu0 0.0
    %284 = vmatpush1.msra.mxu0 0.0
    %285 = vmatprep.subr.mxu0 0.0
    %286 = vmatpush1.msra.mxu0 0.0
    %287 = vmatprep.subr.mxu0 0.0
    %288 = vmatpush1.msra.mxu0 0.0
    %289 = vmatprep.subr.mxu0 0.0
    %290 = vmatpush1.msra.mxu0 0.0
    %291 = vmatprep.subr.mxu0 0.0
    %292 = vmatpush1.msra.mxu0 0.0
    %293 = vmatprep.subr.mxu0 0.0
    %294 = vmatpush1.msra.mxu0 0.0
    %295 = vmatprep.subr.mxu0 0.0
    %296 = vmatpush1.msra.mxu0 0.0
    %297 = vmatprep.subr.mxu0 0.0
    %298 = vmatpush1.msra.mxu0 0.0
    %299 = vmatprep.subr.mxu0 0.0
    %300 = vmatpush1.msra.mxu0 0.0
    %301 = vmatprep.subr.mxu0 0.0
    %302 = vmatpush1.msra.mxu0 0.0
    %303 = vmatprep.subr.mxu0 0.0
    %304 = vmatpush1.msra.mxu0 0.0
    %305 = vmatprep.subr.mxu0 0.0
    %306 = vmatpush1.msra.mxu0 0.0
    %307 = vmatprep.subr.mxu0 0.0
    %308 = vmatpush1.msra.mxu0 0.0
    %309 = vmatprep.subr.mxu0 0.0
    %310 = vmatpush1.msra.mxu0 0.0
    %311 = vmatprep.subr.mxu0 0.0
    %312 = vmatpush1.msra.mxu0 0.0
    %313 = vmatprep.subr.mxu0 0.0
    %314 = vmatpush1.msra.mxu0 0.0
    %315 = vmatprep.subr.mxu0 0.0
    %316 = vmatpush1.msra.mxu0 0.0
    %317 = vmatprep.subr.mxu0 0.0
    %318 = vmatpush1.msra.mxu0 0.0
    %319 = vmatprep.subr.mxu0 0.0
    %320 = vmatpush1.msra.mxu0 0.0
    %321 = vmatprep.subr.mxu0 0.0
    %322 = vmatpush1.msra.mxu0 0.0
    %323 = vmatprep.subr.mxu0 0.0
    %324 = vmatpush1.msra.mxu0 0.0
    %325 = vmatprep.subr.mxu0 0.0
    %326 = vmatpush1.msra.mxu0 0.0
    %327 = vmatprep.subr.mxu0 0.0
    %328 = vmatpush1.msra.mxu0 0.0
    %329 = vmatprep.mubr.f32.mxu0 0.0
    %v330 = vand.u32 %v52, 4294901760
    %v331 = vsub.f32 %v52, %v330
    %332 = vmatmul.mubr.f32.gmra.mrb[0].mxu0 %v331
    %v333 = vpop.f32.mrb[0].mxu0
    %v334 = vadd.f32 %v242, %v333
    %v335 = vpop.f32.mrb[0].mxu0
    %336 = vmatprep.mubr.f32.mxu0 0.0
    %v337 = vand.u32 %v55, 4294901760
    %v338 = vsub.f32 %v55, %v337
    %339 = vmatmul.mubr.f32.gmra.mrb[0].mxu0 %v338
    %v340 = vpop.f32.mrb[0].mxu0
    %v341 = vadd.f32 %v248, %v340
    %v342 = vpop.f32.mrb[0].mxu0
    %343 = vmatprep.mubr.f32.mxu0 0.0
    %v344 = vand.u32 %v58, 4294901760
    %v345 = vsub.f32 %v58, %v344
    %346 = vmatmul.mubr.f32.gmra.mrb[0].mxu0 %v345
    %v347 = vpop.f32.mrb[0].mxu0
    %v348 = vadd.f32 %v254, %v347
    %v349 = vpop.f32.mrb[0].mxu0
    %350 = vmatprep.mubr.f32.mxu0 0.0
    %v351 = vand.u32 %v61, 4294901760
    %v352 = vsub.f32 %v61, %v351
    %353 = vmatmul.mubr.f32.gmra.mrb[0].mxu0 %v352
    %v354 = vpop.f32.mrb[0].mxu0
    %v355 = vadd.f32 %v260, %v354
    %v356 = vpop.f32.mrb[0].mxu0
    %357 = vdwg.mxu0
    %358 = vmatprep.subr.mxu0 0.0
    %v359 = vand.u32 %v25, 4294901760
    %360 = vmatpush1.msra.mxu0 %v359
    %361 = vmatprep.subr.mxu0 0.0
    %362 = vmatpush1.msra.mxu0 0.0
    %363 = vmatprep.subr.mxu0 0.0
    %364 = vmatpush1.msra.mxu0 0.0
    %365 = vmatprep.subr.mxu0 0.0
    %366 = vmatpush1.msra.mxu0 0.0
    %367 = vmatprep.subr.mxu0 0.0
    %368 = vmatpush1.msra.mxu0 0.0
    %369 = vmatprep.subr.mxu0 0.0
    %370 = vmatpush1.msra.mxu0 0.0
    %371 = vmatprep.subr.mxu0 0.0
    %372 = vmatpush1.msra.mxu0 0.0
    %373 = vmatprep.subr.mxu0 0.0
    %374 = vmatpush1.msra.mxu0 0.0
    %375 = vmatprep.subr.mxu0 0.0
    %376 = vmatpush1.msra.mxu0 0.0
    %377 = vmatprep.subr.mxu0 0.0
    %378 = vmatpush1.msra.mxu0 0.0
    %379 = vmatprep.subr.mxu0 0.0
    %380 = vmatpush1.msra.mxu0 0.0
    %381 = vmatprep.subr.mxu0 0.0
    %382 = vmatpush1.msra.mxu0 0.0
    %383 = vmatprep.subr.mxu0 0.0
    %384 = vmatpush1.msra.mxu0 0.0
    %385 = vmatprep.subr.mxu0 0.0
    %386 = vmatpush1.msra.mxu0 0.0
    %387 = vmatprep.subr.mxu0 0.0
    %388 = vmatpush1.msra.mxu0 0.0
    %389 = vmatprep.subr.mxu0 0.0
    %390 = vmatpush1.msra.mxu0 0.0
    %391 = vmatprep.subr.mxu0 0.0
    %392 = vmatpush1.msra.mxu0 0.0
    %393 = vmatprep.subr.mxu0 0.0
    %394 = vmatpush1.msra.mxu0 0.0
    %395 = vmatprep.subr.mxu0 0.0
    %396 = vmatpush1.msra.mxu0 0.0
    %397 = vmatprep.subr.mxu0 0.0
    %398 = vmatpush1.msra.mxu0 0.0
    %399 = vmatprep.subr.mxu0 0.0
    %400 = vmatpush1.msra.mxu0 0.0
    %401 = vmatprep.subr.mxu0 0.0
    %402 = vmatpush1.msra.mxu0 0.0
    %403 = vmatprep.subr.mxu0 0.0
    %404 = vmatpush1.msra.mxu0 0.0
    %405 = vmatprep.subr.mxu0 0.0
    %406 = vmatpush1.msra.mxu0 0.0
    %407 = vmatprep.subr.mxu0 0.0
    %408 = vmatpush1.msra.mxu0 0.0
    %409 = vmatprep.subr.mxu0 0.0
    %410 = vmatpush1.msra.mxu0 0.0
    %411 = vmatprep.subr.mxu0 0.0
    %412 = vmatpush1.msra.mxu0 0.0
    %413 = vmatprep.subr.mxu0 0.0
    %414 = vmatpush1.msra.mxu0 0.0
    %415 = vmatprep.subr.mxu0 0.0
    %416 = vmatpush1.msra.mxu0 0.0
    %417 = vmatprep.subr.mxu0 0.0
    %418 = vmatpush1.msra.mxu0 0.0
    %419 = vmatprep.subr.mxu0 0.0
    %420 = vmatpush1.msra.mxu0 0.0
    %421 = vmatprep.subr.mxu0 0.0
    %422 = vmatpush1.msra.mxu0 0.0
    %423 = vmatprep.mubr.f32.mxu0 0.0
    %v424 = vand.u32 %v52, 4294901760
    %v425 = vsub.f32 %v52, %v424
    %v426 = vand.u32 %v425, 4294901760
    %427 = vmatmul.mubr.f32.gmra.mrb[0].mxu0 %v426
    %v428 = vpop.f32.mrb[0].mxu0
    %v429 = vadd.f32 %v334, %v428
    %v430 = vpop.f32.mrb[0].mxu0
    %431 = vmatprep.mubr.f32.mxu0 0.0
    %v432 = vand.u32 %v55, 4294901760
    %v433 = vsub.f32 %v55, %v432
    %v434 = vand.u32 %v433, 4294901760
    %435 = vmatmul.mubr.f32.gmra.mrb[0].mxu0 %v434
    %v436 = vpop.f32.mrb[0].mxu0
    %v437 = vadd.f32 %v341, %v436
    %v438 = vpop.f32.mrb[0].mxu0
    %439 = vmatprep.mubr.f32.mxu0 0.0
    %v440 = vand.u32 %v58, 4294901760
    %v441 = vsub.f32 %v58, %v440
    %v442 = vand.u32 %v441, 4294901760
    %443 = vmatmul.mubr.f32.gmra.mrb[0].mxu0 %v442
    %v444 = vpop.f32.mrb[0].mxu0
    %v445 = vadd.f32 %v348, %v444
    %v446 = vpop.f32.mrb[0].mxu0
    %447 = vmatprep.mubr.f32.mxu0 0.0
    %v448 = vand.u32 %v61, 4294901760
    %v449 = vsub.f32 %v61, %v448
    %v450 = vand.u32 %v449, 4294901760
    %451 = vmatmul.mubr.f32.gmra.mrb[0].mxu0 %v450
    %v452 = vpop.f32.mrb[0].mxu0
    %v453 = vadd.f32 %v355, %v452
    %v454 = vpop.f32.mrb[0].mxu0
    %455 = vdwg.mxu0
    %456 = vmatprep.subr.mxu0 0.0
    %v457 = vand.u32 %v25, 4294901760
    %v458 = vsub.f32 %v25, %v457
    %v459 = vand.u32 %v458, 4294901760
    %460 = vmatpush1.msra.mxu0 %v459
    %461 = vmatprep.subr.mxu0 0.0
    %462 = vmatpush1.msra.mxu0 0.0
    %463 = vmatprep.subr.mxu0 0.0
    %464 = vmatpush1.msra.mxu0 0.0
    %465 = vmatprep.subr.mxu0 0.0
    %466 = vmatpush1.msra.mxu0 0.0
    %467 = vmatprep.subr.mxu0 0.0
    %468 = vmatpush1.msra.mxu0 0.0
    %469 = vmatprep.subr.mxu0 0.0
    %470 = vmatpush1.msra.mxu0 0.0
    %471 = vmatprep.subr.mxu0 0.0
    %472 = vmatpush1.msra.mxu0 0.0
    %473 = vmatprep.subr.mxu0 0.0
    %474 = vmatpush1.msra.mxu0 0.0
    %475 = vmatprep.subr.mxu0 0.0
    %476 = vmatpush1.msra.mxu0 0.0
    %477 = vmatprep.subr.mxu0 0.0
    %478 = vmatpush1.msra.mxu0 0.0
    %479 = vmatprep.subr.mxu0 0.0
    %480 = vmatpush1.msra.mxu0 0.0
    %481 = vmatprep.subr.mxu0 0.0
    %482 = vmatpush1.msra.mxu0 0.0
    %483 = vmatprep.subr.mxu0 0.0
    %484 = vmatpush1.msra.mxu0 0.0
    %485 = vmatprep.subr.mxu0 0.0
    %486 = vmatpush1.msra.mxu0 0.0
    %487 = vmatprep.subr.mxu0 0.0
    %488 = vmatpush1.msra.mxu0 0.0
    %489 = vmatprep.subr.mxu0 0.0
    %490 = vmatpush1.msra.mxu0 0.0
    %491 = vmatprep.subr.mxu0 0.0
    %492 = vmatpush1.msra.mxu0 0.0
    %493 = vmatprep.subr.mxu0 0.0
    %494 = vmatpush1.msra.mxu0 0.0
    %495 = vmatprep.subr.mxu0 0.0
    %496 = vmatpush1.msra.mxu0 0.0
    %497 = vmatprep.subr.mxu0 0.0
    %498 = vmatpush1.msra.mxu0 0.0
    %499 = vmatprep.subr.mxu0 0.0
    %500 = vmatpush1.msra.mxu0 0.0
    %501 = vmatprep.subr.mxu0 0.0
    %502 = vmatpush1.msra.mxu0 0.0
    %503 = vmatprep.subr.mxu0 0.0
    %504 = vmatpush1.msra.mxu0 0.0
    %505 = vmatprep.subr.mxu0 0.0
    %506 = vmatpush1.msra.mxu0 0.0
    %507 = vmatprep.subr.mxu0 0.0
    %508 = vmatpush1.msra.mxu0 0.0
    %509 = vmatprep.subr.mxu0 0.0
    %510 = vmatpush1.msra.mxu0 0.0
    %511 = vmatprep.subr.mxu0 0.0
    %512 = vmatpush1.msra.mxu0 0.0
    %513 = vmatprep.subr.mxu0 0.0
    %514 = vmatpush1.msra.mxu0 0.0
    %515 = vmatprep.subr.mxu0 0.0
    %516 = vmatpush1.msra.mxu0 0.0
    %517 = vmatprep.subr.mxu0 0.0
    %518 = vmatpush1.msra.mxu0 0.0
    %519 = vmatprep.subr.mxu0 0.0
    %520 = vmatpush1.msra.mxu0 0.0
    %521 = vmatprep.subr.mxu0 0.0
    %522 = vmatpush1.msra.mxu0 0.0
    %523 = vmatprep.mubr.f32.mxu0 0.0
    %v524 = vand.u32 %v52, 4294901760
    %525 = vmatmul.mubr.f32.gmra.mrb[0].mxu0 %v524
    %v526 = vpop.f32.mrb[0].mxu0
    %v527 = vadd.f32 %v429, %v526
    %v528 = vpop.f32.mrb[0].mxu0
    %529 = vmatprep.mubr.f32.mxu0 0.0
    %v530 = vand.u32 %v55, 4294901760
    %531 = vmatmul.mubr.f32.gmra.mrb[0].mxu0 %v530
    %v532 = vpop.f32.mrb[0].mxu0
    %v533 = vadd.f32 %v437, %v532
    %v534 = vpop.f32.mrb[0].mxu0
    %535 = vmatprep.mubr.f32.mxu0 0.0
    %v536 = vand.u32 %v58, 4294901760
    %537 = vmatmul.mubr.f32.gmra.mrb[0].mxu0 %v536
    %v538 = vpop.f32.mrb[0].mxu0
    %v539 = vadd.f32 %v445, %v538
    %v540 = vpop.f32.mrb[0].mxu0
    %541 = vmatprep.mubr.f32.mxu0 0.0
    %v542 = vand.u32 %v61, 4294901760
    %543 = vmatmul.mubr.f32.gmra.mrb[0].mxu0 %v542
    %v544 = vpop.f32.mrb[0].mxu0
    %v545 = vadd.f32 %v453, %v544
    %v546 = vpop.f32.mrb[0].mxu0
    %547 = vdwg.mxu0
    %548 = vmatprep.subr.mxu0 0.0
    %v549 = vand.u32 %v25, 4294901760
    %550 = vmatpush1.msra.mxu0 %v549
    %551 = vmatprep.subr.mxu0 0.0
    %552 = vmatpush1.msra.mxu0 0.0
    %553 = vmatprep.subr.mxu0 0.0
    %554 = vmatpush1.msra.mxu0 0.0
    %555 = vmatprep.subr.mxu0 0.0
    %556 = vmatpush1.msra.mxu0 0.0
    %557 = vmatprep.subr.mxu0 0.0
    %558 = vmatpush1.msra.mxu0 0.0
    %559 = vmatprep.subr.mxu0 0.0
    %560 = vmatpush1.msra.mxu0 0.0
    %561 = vmatprep.subr.mxu0 0.0
    %562 = vmatpush1.msra.mxu0 0.0
    %563 = vmatprep.subr.mxu0 0.0
    %564 = vmatpush1.msra.mxu0 0.0
    %565 = vmatprep.subr.mxu0 0.0
    %566 = vmatpush1.msra.mxu0 0.0
    %567 = vmatprep.subr.mxu0 0.0
    %568 = vmatpush1.msra.mxu0 0.0
    %569 = vmatprep.subr.mxu0 0.0
    %570 = vmatpush1.msra.mxu0 0.0
    %571 = vmatprep.subr.mxu0 0.0
    %572 = vmatpush1.msra.mxu0 0.0
    %573 = vmatprep.subr.mxu0 0.0
    %574 = vmatpush1.msra.mxu0 0.0
    %575 = vmatprep.subr.mxu0 0.0
    %576 = vmatpush1.msra.mxu0 0.0
    %577 = vmatprep.subr.mxu0 0.0
    %578 = vmatpush1.msra.mxu0 0.0
    %579 = vmatprep.subr.mxu0 0.0
    %580 = vmatpush1.msra.mxu0 0.0
    %581 = vmatprep.subr.mxu0 0.0
    %582 = vmatpush1.msra.mxu0 0.0
    %583 = vmatprep.subr.mxu0 0.0
    %584 = vmatpush1.msra.mxu0 0.0
    %585 = vmatprep.subr.mxu0 0.0
    %586 = vmatpush1.msra.mxu0 0.0
    %587 = vmatprep.subr.mxu0 0.0
    %588 = vmatpush1.msra.mxu0 0.0
    %589 = vmatprep.subr.mxu0 0.0
    %590 = vmatpush1.msra.mxu0 0.0
    %591 = vmatprep.subr.mxu0 0.0
    %592 = vmatpush1.msra.mxu0 0.0
    %593 = vmatprep.subr.mxu0 0.0
    %594 = vmatpush1.msra.mxu0 0.0
    %595 = vmatprep.subr.mxu0 0.0
    %596 = vmatpush1.msra.mxu0 0.0
    %597 = vmatprep.subr.mxu0 0.0
    %598 = vmatpush1.msra.mxu0 0.0
    %599 = vmatprep.subr.mxu0 0.0
    %600 = vmatpush1.msra.mxu0 0.0
    %601 = vmatprep.subr.mxu0 0.0
    %602 = vmatpush1.msra.mxu0 0.0
    %603 = vmatprep.subr.mxu0 0.0
    %604 = vmatpush1.msra.mxu0 0.0
    %605 = vmatprep.subr.mxu0 0.0
    %606 = vmatpush1.msra.mxu0 0.0
    %607 = vmatprep.subr.mxu0 0.0
    %608 = vmatpush1.msra.mxu0 0.0
    %609 = vmatprep.subr.mxu0 0.0
    %610 = vmatpush1.msra.mxu0 0.0
    %611 = vmatprep.subr.mxu0 0.0
    %612 = vmatpush1.msra.mxu0 0.0
    %613 = vmatprep.mubr.f32.mxu0 0.0
    %v614 = vand.u32 %v52, 4294901760
    %615 = vmatmul.mubr.f32.gmra.mrb[0].mxu0 %v614
    %v616 = vpop.f32.mrb[0].mxu0
    %v617 = vadd.f32 %v527, %v616
    %v618 = vpop.f32.mrb[0].mxu0
    %619 = vmatprep.mubr.f32.mxu0 0.0
    %v620 = vand.u32 %v55, 4294901760
    %621 = vmatmul.mubr.f32.gmra.mrb[0].mxu0 %v620
    %v622 = vpop.f32.mrb[0].mxu0
    %v623 = vadd.f32 %v533, %v622
    %v624 = vpop.f32.mrb[0].mxu0
    %625 = vmatprep.mubr.f32.mxu0 0.0
    %v626 = vand.u32 %v58, 4294901760
    %627 = vmatmul.mubr.f32.gmra.mrb[0].mxu0 %v626
    %v628 = vpop.f32.mrb[0].mxu0
    %v629 = vadd.f32 %v539, %v628
    %v630 = vpop.f32.mrb[0].mxu0
    %631 = vmatprep.mubr.f32.mxu0 0.0
    %v632 = vand.u32 %v61, 4294901760
    %633 = vmatmul.mubr.f32.gmra.mrb[0].mxu0 %v632
    %v634 = vpop.f32.mrb[0].mxu0
    %v635 = vadd.f32 %v545, %v634
    %v636 = vpop.f32.mrb[0].mxu0
    %637 = vdwg.mxu0
    %v638 = vmax.f32 %v617, 0.0
    %v639 = vmax.f32 %v623, 0.0
    %v640 = vmax.f32 %v629, 0.0
    %v641 = vmax.f32 %v635, 0.0
    %v642 = vld [vmem:[%s3] sm:$0xf]
    %v643 = vld [vmem:[%s4] sm:$0xf]
    %645 = vset.pattern.permute.xlu0 0
    %646 = vperm.xlu0 %645, %v643
    %v647 = vpop.permute.xlu0 %646
    %vm649 = vcmask 261120
    %v651 = vsel %vm649, %v642, 0
    %653 = vmatprep.subr.mxu0 0.0
    %v654 = vand.u32 %v638, 4294901760
    %655 = vmatpush1.msra.mxu0 %v654
    %656 = vmatprep.subr.mxu0 0.0
    %v657 = vand.u32 %v639, 4294901760
    %658 = vmatpush1.msra.mxu0 %v657
    %659 = vmatprep.subr.mxu0 0.0
    %v660 = vand.u32 %v640, 4294901760
    %661 = vmatpush1.msra.mxu0 %v660
    %662 = vmatprep.subr.mxu0 0.0
    %v663 = vand.u32 %v641, 4294901760
    %664 = vmatpush1.msra.mxu0 %v663
    %665 = vmatprep.subr.mxu0 0.0
    %666 = vmatpush1.msra.mxu0 0.0
    %667 = vmatprep.subr.mxu0 0.0
    %668 = vmatpush1.msra.mxu0 0.0
    %669 = vmatprep.subr.mxu0 0.0
    %670 = vmatpush1.msra.mxu0 0.0
    %671 = vmatprep.subr.mxu0 0.0
    %672 = vmatpush1.msra.mxu0 0.0
    %673 = vmatprep.subr.mxu0 0.0
    %674 = vmatpush1.msra.mxu0 0.0
    %675 = vmatprep.subr.mxu0 0.0
    %676 = vmatpush1.msra.mxu0 0.0
    %677 = vmatprep.subr.mxu0 0.0
    %678 = vmatpush1.msra.mxu0 0.0
    %679 = vmatprep.subr.mxu0 0.0
    %680 = vmatpush1.msra.mxu0 0.0
    %681 = vmatprep.subr.mxu0 0.0
    %682 = vmatpush1.msra.mxu0 0.0
    %683 = vmatprep.subr.mxu0 0.0
    %684 = vmatpush1.msra.mxu0 0.0
    %685 = vmatprep.subr.mxu0 0.0
    %686 = vmatpush1.msra.mxu0 0.0
    %687 = vmatprep.subr.mxu0 0.0
    %688 = vmatpush1.msra.mxu0 0.0
    %689 = vmatprep.subr.mxu0 0.0
    %690 = vmatpush1.msra.mxu0 0.0
    %691 = vmatprep.subr.mxu0 0.0
    %692 = vmatpush1.msra.mxu0 0.0
    %693 = vmatprep.subr.mxu0 0.0
    %694 = vmatpush1.msra.mxu0 0.0
    %695 = vmatprep.subr.mxu0 0.0
    %696 = vmatpush1.msra.mxu0 0.0
    %697 = vmatprep.subr.mxu0 0.0
    %698 = vmatpush1.msra.mxu0 0.0
    %699 = vmatprep.subr.mxu0 0.0
    %700 = vmatpush1.msra.mxu0 0.0
    %701 = vmatprep.subr.mxu0 0.0
    %702 = vmatpush1.msra.mxu0 0.0
    %703 = vmatprep.subr.mxu0 0.0
    %704 = vmatpush1.msra.mxu0 0.0
    %705 = vmatprep.subr.mxu0 0.0
    %706 = vmatpush1.msra.mxu0 0.0
    %707 = vmatprep.subr.mxu0 0.0
    %708 = vmatpush1.msra.mxu0 0.0
    %709 = vmatprep.subr.mxu0 0.0
    %710 = vmatpush1.msra.mxu0 0.0
    %711 = vmatprep.subr.mxu0 0.0
    %712 = vmatpush1.msra.mxu0 0.0
    %713 = vmatprep.subr.mxu0 0.0
    %714 = vmatpush1.msra.mxu0 0.0
    %715 = vmatprep.subr.mxu0 0.0
    %716 = vmatpush1.msra.mxu0 0.0
    %717 = vmatprep.subr.mxu0 0.0
    %718 = vmatpush1.msra.mxu0 0.0
    %719 = vmatprep.subr.mxu0 0.0
    %720 = vmatpush1.msra.mxu0 0.0
    %721 = vmatprep.mubr.f32.mxu0 0.0
    %v722 = vand.u32 %v651, 4294901760
    %v723 = vsub.f32 %v651, %v722
    %v724 = vand.u32 %v723, 4294901760
    %v725 = vsub.f32 %v723, %v724
    %v726 = vand.u32 %v725, 4294901760
    %727 = vmatmul.mubr.f32.gmra.mrb[0].mxu0 %v726
    %v728 = vpop.f32.mrb[0].mxu0
    %v729 = vadd.f32 %v647, %v728
    %v730 = vpop.f32.mrb[0].mxu0
    %731 = vdwg.mxu0
    %732 = vmatprep.subr.mxu0 0.0
    %v733 = vand.u32 %v638, 4294901760
    %v734 = vsub.f32 %v638, %v733
    %v735 = vand.u32 %v734, 4294901760
    %v736 = vsub.f32 %v734, %v735
    %v737 = vand.u32 %v736, 4294901760
    %738 = vmatpush1.msra.mxu0 %v737
    %739 = vmatprep.subr.mxu0 0.0
    %v740 = vand.u32 %v639, 4294901760
    %v741 = vsub.f32 %v639, %v740
    %v742 = vand.u32 %v741, 4294901760
    %v743 = vsub.f32 %v741, %v742
    %v744 = vand.u32 %v743, 4294901760
    %745 = vmatpush1.msra.mxu0 %v744
    %746 = vmatprep.subr.mxu0 0.0
    %v747 = vand.u32 %v640, 4294901760
    %v748 = vsub.f32 %v640, %v747
    %v749 = vand.u32 %v748, 4294901760
    %v750 = vsub.f32 %v748, %v749
    %v751 = vand.u32 %v750, 4294901760
    %752 = vmatpush1.msra.mxu0 %v751
    %753 = vmatprep.subr.mxu0 0.0
    %v754 = vand.u32 %v641, 4294901760
    %v755 = vsub.f32 %v641, %v754
    %v756 = vand.u32 %v755, 4294901760
    %v757 = vsub.f32 %v755, %v756
    %v758 = vand.u32 %v757, 4294901760
    %759 = vmatpush1.msra.mxu0 %v758
    %760 = vmatprep.subr.mxu0 0.0
    %761 = vmatpush1.msra.mxu0 0.0
    %762 = vmatprep.subr.mxu0 0.0
    %763 = vmatpush1.msra.mxu0 0.0
    %764 = vmatprep.subr.mxu0 0.0
    %765 = vmatpush1.msra.mxu0 0.0
    %766 = vmatprep.subr.mxu0 0.0
    %767 = vmatpush1.msra.mxu0 0.0
    %768 = vmatprep.subr.mxu0 0.0
    %769 = vmatpush1.msra.mxu0 0.0
    %770 = vmatprep.subr.mxu0 0.0
    %771 = vmatpush1.msra.mxu0 0.0
    %772 = vmatprep.subr.mxu0 0.0
    %773 = vmatpush1.msra.mxu0 0.0
    %774 = vmatprep.subr.mxu0 0.0
    %775 = vmatpush1.msra.mxu0 0.0
    %776 = vmatprep.subr.mxu0 0.0
    %777 = vmatpush1.msra.mxu0 0.0
    %778 = vmatprep.subr.mxu0 0.0
    %779 = vmatpush1.msra.mxu0 0.0
    %780 = vmatprep.subr.mxu0 0.0
    %781 = vmatpush1.msra.mxu0 0.0
    %782 = vmatprep.subr.mxu0 0.0
    %783 = vmatpush1.msra.mxu0 0.0
    %784 = vmatprep.subr.mxu0 0.0
    %785 = vmatpush1.msra.mxu0 0.0
    %786 = vmatprep.subr.mxu0 0.0
    %787 = vmatpush1.msra.mxu0 0.0
    %788 = vmatprep.subr.mxu0 0.0
    %789 = vmatpush1.msra.mxu0 0.0
    %790 = vmatprep.subr.mxu0 0.0
    %791 = vmatpush1.msra.mxu0 0.0
    %792 = vmatprep.subr.mxu0 0.0
    %793 = vmatpush1.msra.mxu0 0.0
    %794 = vmatprep.subr.mxu0 0.0
    %795 = vmatpush1.msra.mxu0 0.0
    %796 = vmatprep.subr.mxu0 0.0
    %797 = vmatpush1.msra.mxu0 0.0
    %798 = vmatprep.subr.mxu0 0.0
    %799 = vmatpush1.msra.mxu0 0.0
    %800 = vmatprep.subr.mxu0 0.0
    %801 = vmatpush1.msra.mxu0 0.0
    %802 = vmatprep.subr.mxu0 0.0
    %803 = vmatpush1.msra.mxu0 0.0
    %804 = vmatprep.subr.mxu0 0.0
    %805 = vmatpush1.msra.mxu0 0.0
    %806 = vmatprep.subr.mxu0 0.0
    %807 = vmatpush1.msra.mxu0 0.0
    %808 = vmatprep.subr.mxu0 0.0
    %809 = vmatpush1.msra.mxu0 0.0
    %810 = vmatprep.subr.mxu0 0.0
    %811 = vmatpush1.msra.mxu0 0.0
    %812 = vmatprep.subr.mxu0 0.0
    %813 = vmatpush1.msra.mxu0 0.0
    %814 = vmatprep.subr.mxu0 0.0
    %815 = vmatpush1.msra.mxu0 0.0
    %816 = vmatprep.mubr.f32.mxu0 0.0
    %v817 = vand.u32 %v651, 4294901760
    %818 = vmatmul.mubr.f32.gmra.mrb[0].mxu0 %v817
    %v819 = vpop.f32.mrb[0].mxu0
    %v820 = vadd.f32 %v729, %v819
    %v821 = vpop.f32.mrb[0].mxu0
    %822 = vdwg.mxu0
    %823 = vmatprep.subr.mxu0 0.0
    %v824 = vand.u32 %v638, 4294901760
    %v825 = vsub.f32 %v638, %v824
    %826 = vmatpush1.msra.mxu0 %v825
    %827 = vmatprep.subr.mxu0 0.0
    %v828 = vand.u32 %v639, 4294901760
    %v829 = vsub.f32 %v639, %v828
    %830 = vmatpush1.msra.mxu0 %v829
    %831 = vmatprep.subr.mxu0 0.0
    %v832 = vand.u32 %v640, 4294901760
    %v833 = vsub.f32 %v640, %v832
    %834 = vmatpush1.msra.mxu0 %v833
    %835 = vmatprep.subr.mxu0 0.0
    %v836 = vand.u32 %v641, 4294901760
    %v837 = vsub.f32 %v641, %v836
    %838 = vmatpush1.msra.mxu0 %v837
    %839 = vmatprep.subr.mxu0 0.0
    %840 = vmatpush1.msra.mxu0 0.0
    %841 = vmatprep.subr.mxu0 0.0
    %842 = vmatpush1.msra.mxu0 0.0
    %843 = vmatprep.subr.mxu0 0.0
    %844 = vmatpush1.msra.mxu0 0.0
    %845 = vmatprep.subr.mxu0 0.0
    %846 = vmatpush1.msra.mxu0 0.0
    %847 = vmatprep.subr.mxu0 0.0
    %848 = vmatpush1.msra.mxu0 0.0
    %849 = vmatprep.subr.mxu0 0.0
    %850 = vmatpush1.msra.mxu0 0.0
    %851 = vmatprep.subr.mxu0 0.0
    %852 = vmatpush1.msra.mxu0 0.0
    %853 = vmatprep.subr.mxu0 0.0
    %854 = vmatpush1.msra.mxu0 0.0
    %855 = vmatprep.subr.mxu0 0.0
    %856 = vmatpush1.msra.mxu0 0.0
    %857 = vmatprep.subr.mxu0 0.0
    %858 = vmatpush1.msra.mxu0 0.0
    %859 = vmatprep.subr.mxu0 0.0
    %860 = vmatpush1.msra.mxu0 0.0
    %861 = vmatprep.subr.mxu0 0.0
    %862 = vmatpush1.msra.mxu0 0.0
    %863 = vmatprep.subr.mxu0 0.0
    %864 = vmatpush1.msra.mxu0 0.0
    %865 = vmatprep.subr.mxu0 0.0
    %866 = vmatpush1.msra.mxu0 0.0
    %867 = vmatprep.subr.mxu0 0.0
    %868 = vmatpush1.msra.mxu0 0.0
    %869 = vmatprep.subr.mxu0 0.0
    %870 = vmatpush1.msra.mxu0 0.0
    %871 = vmatprep.subr.mxu0 0.0
    %872 = vmatpush1.msra.mxu0 0.0
    %873 = vmatprep.subr.mxu0 0.0
    %874 = vmatpush1.msra.mxu0 0.0
    %875 = vmatprep.subr.mxu0 0.0
    %876 = vmatpush1.msra.mxu0 0.0
    %877 = vmatprep.subr.mxu0 0.0
    %878 = vmatpush1.msra.mxu0 0.0
    %879 = vmatprep.subr.mxu0 0.0
    %880 = vmatpush1.msra.mxu0 0.0
    %881 = vmatprep.subr.mxu0 0.0
    %882 = vmatpush1.msra.mxu0 0.0
    %883 = vmatprep.subr.mxu0 0.0
    %884 = vmatpush1.msra.mxu0 0.0
    %885 = vmatprep.subr.mxu0 0.0
    %886 = vmatpush1.msra.mxu0 0.0
    %887 = vmatprep.subr.mxu0 0.0
    %888 = vmatpush1.msra.mxu0 0.0
    %889 = vmatprep.subr.mxu0 0.0
    %890 = vmatpush1.msra.mxu0 0.0
    %891 = vmatprep.subr.mxu0 0.0
    %892 = vmatpush1.msra.mxu0 0.0
    %893 = vmatprep.subr.mxu0 0.0
    %894 = vmatpush1.msra.mxu0 0.0
    %895 = vmatprep.mubr.f32.mxu0 0.0
    %v896 = vand.u32 %v651, 4294901760
    %v897 = vsub.f32 %v651, %v896
    %898 = vmatmul.mubr.f32.gmra.mrb[0].mxu0 %v897
    %v899 = vpop.f32.mrb[0].mxu0
    %v900 = vadd.f32 %v820, %v899
    %v901 = vpop.f32.mrb[0].mxu0
    %902 = vdwg.mxu0
    %903 = vmatprep.subr.mxu0 0.0
    %v904 = vand.u32 %v638, 4294901760
    %905 = vmatpush1.msra.mxu0 %v904
    %906 = vmatprep.subr.mxu0 0.0
    %v907 = vand.u32 %v639, 4294901760
    %908 = vmatpush1.msra.mxu0 %v907
    %909 = vmatprep.subr.mxu0 0.0
    %v910 = vand.u32 %v640, 4294901760
    %911 = vmatpush1.msra.mxu0 %v910
    %912 = vmatprep.subr.mxu0 0.0
    %v913 = vand.u32 %v641, 4294901760
    %914 = vmatpush1.msra.mxu0 %v913
    %915 = vmatprep.subr.mxu0 0.0
    %916 = vmatpush1.msra.mxu0 0.0
    %917 = vmatprep.subr.mxu0 0.0
    %918 = vmatpush1.msra.mxu0 0.0
    %919 = vmatprep.subr.mxu0 0.0
    %920 = vmatpush1.msra.mxu0 0.0
    %921 = vmatprep.subr.mxu0 0.0
    %922 = vmatpush1.msra.mxu0 0.0
    %923 = vmatprep.subr.mxu0 0.0
    %924 = vmatpush1.msra.mxu0 0.0
    %925 = vmatprep.subr.mxu0 0.0
    %926 = vmatpush1.msra.mxu0 0.0
    %927 = vmatprep.subr.mxu0 0.0
    %928 = vmatpush1.msra.mxu0 0.0
    %929 = vmatprep.subr.mxu0 0.0
    %930 = vmatpush1.msra.mxu0 0.0
    %931 = vmatprep.subr.mxu0 0.0
    %932 = vmatpush1.msra.mxu0 0.0
    %933 = vmatprep.subr.mxu0 0.0
    %934 = vmatpush1.msra.mxu0 0.0
    %935 = vmatprep.subr.mxu0 0.0
    %936 = vmatpush1.msra.mxu0 0.0
    %937 = vmatprep.subr.mxu0 0.0
    %938 = vmatpush1.msra.mxu0 0.0
    %939 = vmatprep.subr.mxu0 0.0
    %940 = vmatpush1.msra.mxu0 0.0
    %941 = vmatprep.subr.mxu0 0.0
    %942 = vmatpush1.msra.mxu0 0.0
    %943 = vmatprep.subr.mxu0 0.0
    %944 = vmatpush1.msra.mxu0 0.0
    %945 = vmatprep.subr.mxu0 0.0
    %946 = vmatpush1.msra.mxu0 0.0
    %947 = vmatprep.subr.mxu0 0.0
    %948 = vmatpush1.msra.mxu0 0.0
    %949 = vmatprep.subr.mxu0 0.0
    %950 = vmatpush1.msra.mxu0 0.0
    %951 = vmatprep.subr.mxu0 0.0
    %952 = vmatpush1.msra.mxu0 0.0
    %953 = vmatprep.subr.mxu0 0.0
    %954 = vmatpush1.msra.mxu0 0.0
    %955 = vmatprep.subr.mxu0 0.0
    %956 = vmatpush1.msra.mxu0 0.0
    %957 = vmatprep.subr.mxu0 0.0
    %958 = vmatpush1.msra.mxu0 0.0
    %959 = vmatprep.subr.mxu0 0.0
    %960 = vmatpush1.msra.mxu0 0.0
    %961 = vmatprep.subr.mxu0 0.0
    %962 = vmatpush1.msra.mxu0 0.0
    %963 = vmatprep.subr.mxu0 0.0
    %964 = vmatpush1.msra.mxu0 0.0
    %965 = vmatprep.subr.mxu0 0.0
    %966 = vmatpush1.msra.mxu0 0.0
    %967 = vmatprep.subr.mxu0 0.0
    %968 = vmatpush1.msra.mxu0 0.0
    %969 = vmatprep.subr.mxu0 0.0
    %970 = vmatpush1.msra.mxu0 0.0
    %971 = vmatprep.mubr.f32.mxu0 0.0
    %v972 = vand.u32 %v651, 4294901760
    %v973 = vsub.f32 %v651, %v972
    %v974 = vand.u32 %v973, 4294901760
    %975 = vmatmul.mubr.f32.gmra.mrb[0].mxu0 %v974
    %v976 = vpop.f32.mrb[0].mxu0
    %v977 = vadd.f32 %v900, %v976
    %v978 = vpop.f32.mrb[0].mxu0
    %979 = vdwg.mxu0
    %980 = vmatprep.subr.mxu0 0.0
    %v981 = vand.u32 %v638, 4294901760
    %v982 = vsub.f32 %v638, %v981
    %v983 = vand.u32 %v982, 4294901760
    %984 = vmatpush1.msra.mxu0 %v983
    %985 = vmatprep.subr.mxu0 0.0
    %v986 = vand.u32 %v639, 4294901760
    %v987 = vsub.f32 %v639, %v986
    %v988 = vand.u32 %v987, 4294901760
    %989 = vmatpush1.msra.mxu0 %v988
    %990 = vmatprep.subr.mxu0 0.0
    %v991 = vand.u32 %v640, 4294901760
    %v992 = vsub.f32 %v640, %v991
    %v993 = vand.u32 %v992, 4294901760
    %994 = vmatpush1.msra.mxu0 %v993
    %995 = vmatprep.subr.mxu0 0.0
    %v996 = vand.u32 %v641, 4294901760
    %v997 = vsub.f32 %v641, %v996
    %v998 = vand.u32 %v997, 4294901760
    %999 = vmatpush1.msra.mxu0 %v998
    %1000 = vmatprep.subr.mxu0 0.0
    %1001 = vmatpush1.msra.mxu0 0.0
    %1002 = vmatprep.subr.mxu0 0.0
    %1003 = vmatpush1.msra.mxu0 0.0
    %1004 = vmatprep.subr.mxu0 0.0
    %1005 = vmatpush1.msra.mxu0 0.0
    %1006 = vmatprep.subr.mxu0 0.0
    %1007 = vmatpush1.msra.mxu0 0.0
    %1008 = vmatprep.subr.mxu0 0.0
    %1009 = vmatpush1.msra.mxu0 0.0
    %1010 = vmatprep.subr.mxu0 0.0
    %1011 = vmatpush1.msra.mxu0 0.0
    %1012 = vmatprep.subr.mxu0 0.0
    %1013 = vmatpush1.msra.mxu0 0.0
    %1014 = vmatprep.subr.mxu0 0.0
    %1015 = vmatpush1.msra.mxu0 0.0
    %1016 = vmatprep.subr.mxu0 0.0
    %1017 = vmatpush1.msra.mxu0 0.0
    %1018 = vmatprep.subr.mxu0 0.0
    %1019 = vmatpush1.msra.mxu0 0.0
    %1020 = vmatprep.subr.mxu0 0.0
    %1021 = vmatpush1.msra.mxu0 0.0
    %1022 = vmatprep.subr.mxu0 0.0
    %1023 = vmatpush1.msra.mxu0 0.0
    %1024 = vmatprep.subr.mxu0 0.0
    %1025 = vmatpush1.msra.mxu0 0.0
    %1026 = vmatprep.subr.mxu0 0.0
    %1027 = vmatpush1.msra.mxu0 0.0
    %1028 = vmatprep.subr.mxu0 0.0
    %1029 = vmatpush1.msra.mxu0 0.0
    %1030 = vmatprep.subr.mxu0 0.0
    %1031 = vmatpush1.msra.mxu0 0.0
    %1032 = vmatprep.subr.mxu0 0.0
    %1033 = vmatpush1.msra.mxu0 0.0
    %1034 = vmatprep.subr.mxu0 0.0
    %1035 = vmatpush1.msra.mxu0 0.0
    %1036 = vmatprep.subr.mxu0 0.0
    %1037 = vmatpush1.msra.mxu0 0.0
    %1038 = vmatprep.subr.mxu0 0.0
    %1039 = vmatpush1.msra.mxu0 0.0
    %1040 = vmatprep.subr.mxu0 0.0
    %1041 = vmatpush1.msra.mxu0 0.0
    %1042 = vmatprep.subr.mxu0 0.0
    %1043 = vmatpush1.msra.mxu0 0.0
    %1044 = vmatprep.subr.mxu0 0.0
    %1045 = vmatpush1.msra.mxu0 0.0
    %1046 = vmatprep.subr.mxu0 0.0
    %1047 = vmatpush1.msra.mxu0 0.0
    %1048 = vmatprep.subr.mxu0 0.0
    %1049 = vmatpush1.msra.mxu0 0.0
    %1050 = vmatprep.subr.mxu0 0.0
    %1051 = vmatpush1.msra.mxu0 0.0
    %1052 = vmatprep.subr.mxu0 0.0
    %1053 = vmatpush1.msra.mxu0 0.0
    %1054 = vmatprep.subr.mxu0 0.0
    %1055 = vmatpush1.msra.mxu0 0.0
    %1056 = vmatprep.mubr.f32.mxu0 0.0
    %v1057 = vand.u32 %v651, 4294901760
    %1058 = vmatmul.mubr.f32.gmra.mrb[0].mxu0 %v1057
    %v1059 = vpop.f32.mrb[0].mxu0
    %v1060 = vadd.f32 %v977, %v1059
    %v1061 = vpop.f32.mrb[0].mxu0
    %1062 = vdwg.mxu0
    %1063 = vmatprep.subr.mxu0 0.0
    %v1064 = vand.u32 %v638, 4294901760
    %1065 = vmatpush1.msra.mxu0 %v1064
    %1066 = vmatprep.subr.mxu0 0.0
    %v1067 = vand.u32 %v639, 4294901760
    %1068 = vmatpush1.msra.mxu0 %v1067
    %1069 = vmatprep.subr.mxu0 0.0
    %v1070 = vand.u32 %v640, 4294901760
    %1071 = vmatpush1.msra.mxu0 %v1070
    %1072 = vmatprep.subr.mxu0 0.0
    %v1073 = vand.u32 %v641, 4294901760
    %1074 = vmatpush1.msra.mxu0 %v1073
    %1075 = vmatprep.subr.mxu0 0.0
    %1076 = vmatpush1.msra.mxu0 0.0
    %1077 = vmatprep.subr.mxu0 0.0
    %1078 = vmatpush1.msra.mxu0 0.0
    %1079 = vmatprep.subr.mxu0 0.0
    %1080 = vmatpush1.msra.mxu0 0.0
    %1081 = vmatprep.subr.mxu0 0.0
    %1082 = vmatpush1.msra.mxu0 0.0
    %1083 = vmatprep.subr.mxu0 0.0
    %1084 = vmatpush1.msra.mxu0 0.0
    %1085 = vmatprep.subr.mxu0 0.0
    %1086 = vmatpush1.msra.mxu0 0.0
    %1087 = vmatprep.subr.mxu0 0.0
    %1088 = vmatpush1.msra.mxu0 0.0
    %1089 = vmatprep.subr.mxu0 0.0
    %1090 = vmatpush1.msra.mxu0 0.0
    %1091 = vmatprep.subr.mxu0 0.0
    %1092 = vmatpush1.msra.mxu0 0.0
    %1093 = vmatprep.subr.mxu0 0.0
    %1094 = vmatpush1.msra.mxu0 0.0
    %1095 = vmatprep.subr.mxu0 0.0
    %1096 = vmatpush1.msra.mxu0 0.0
    %1097 = vmatprep.subr.mxu0 0.0
    %1098 = vmatpush1.msra.mxu0 0.0
    %1099 = vmatprep.subr.mxu0 0.0
    %1100 = vmatpush1.msra.mxu0 0.0
    %1101 = vmatprep.subr.mxu0 0.0
    %1102 = vmatpush1.msra.mxu0 0.0
    %1103 = vmatprep.subr.mxu0 0.0
    %1104 = vmatpush1.msra.mxu0 0.0
    %1105 = vmatprep.subr.mxu0 0.0
    %1106 = vmatpush1.msra.mxu0 0.0
    %1107 = vmatprep.subr.mxu0 0.0
    %1108 = vmatpush1.msra.mxu0 0.0
    %1109 = vmatprep.subr.mxu0 0.0
    %1110 = vmatpush1.msra.mxu0 0.0
    %1111 = vmatprep.subr.mxu0 0.0
    %1112 = vmatpush1.msra.mxu0 0.0
    %1113 = vmatprep.subr.mxu0 0.0
    %1114 = vmatpush1.msra.mxu0 0.0
    %1115 = vmatprep.subr.mxu0 0.0
    %1116 = vmatpush1.msra.mxu0 0.0
    %1117 = vmatprep.subr.mxu0 0.0
    %1118 = vmatpush1.msra.mxu0 0.0
    %1119 = vmatprep.subr.mxu0 0.0
    %1120 = vmatpush1.msra.mxu0 0.0
    %1121 = vmatprep.subr.mxu0 0.0
    %1122 = vmatpush1.msra.mxu0 0.0
    %1123 = vmatprep.subr.mxu0 0.0
    %1124 = vmatpush1.msra.mxu0 0.0
    %1125 = vmatprep.subr.mxu0 0.0
    %1126 = vmatpush1.msra.mxu0 0.0
    %1127 = vmatprep.subr.mxu0 0.0
    %1128 = vmatpush1.msra.mxu0 0.0
    %1129 = vmatprep.subr.mxu0 0.0
    %1130 = vmatpush1.msra.mxu0 0.0
    %1131 = vmatprep.mubr.f32.mxu0 0.0
    %v1132 = vand.u32 %v651, 4294901760
    %1133 = vmatmul.mubr.f32.gmra.mrb[0].mxu0 %v1132
    %v1134 = vpop.f32.mrb[0].mxu0
    %v1135 = vadd.f32 %v1060, %v1134
    %v1136 = vpop.f32.mrb[0].mxu0
    %1137 = vdwg.mxu0
    %v1138 = vlaneseq
    %v1139 = vshrl.u32 %v1138, 7
    %v1140 = vmax.f32 %v1135, 0.0
    %v1141 = vand.u32 2147483647, %v1135
    %v1142 = vsub.f32 0.0, %v1141
    %v1143 = vmul.f32 %v1142, 1.442695
    %v1144 = vpow.pop %v1143
    %v1145 = vadd.f32 %v1144, 1.0
    %v1146 = vlog2.pop %v1145
    %v1147 = vmul.f32 %v1146, 0.6931472
    %v1148 = vmul.f32 -0.5, %v1144
    %v1149 = vadd.f32 %v1148, 1.0
    %v1150 = vmul.f32 %v1149, %v1144
    %v1151 = vand.u32 2147483647, %v1144
    %vm1152 = vcmp.lt.f32.partialorder %v1151, 0.0004427343
    %v1153 = vsel %vm1152, %v1150, %v1147
    %v1154 = vadd.f32 %v1140, %v1153
    %vm1155 = vcmp.ge.s32.totalorder %v1139, 2
    %v1156 = vsel %vm1155, %v1154, %v1135
    %vm1157 = vcmask 60416
    %1158 = vst.msk [vmem:[#allocation2] sm:$0xf] %vm1157, %v1156
    // Predicated region
    $region22: #{tpu_custom_call.1} parent=1 // pred_check
      _
    $region23: #{tpu_custom_call.1} parent=1 // pred_check_branch
      %1160 = sbr.rel (0) target = $region25
    $region24: #{tpu_custom_call.1} parent=1 // pred_region
      %s1162 = ssub.s32 64, 64
      %1163 = vsyncadd [#allocation3], %s1162
      %s1165 = sshll.u32 [#allocation2], 4
      %s1166 = int_to_ptr.vmem [resolvable:$true] %s1165
      %1168 = dma.vmem_to_hbm [thread:$0]  %s1166, 64, %s5, [#allocation3]
    $region25: #{tpu_custom_call.1} parent=1 // pred_fallthru
      _
    // Predicated region
    $region26: #{tpu_custom_call.1} parent=1 // pred_check
      _
    $region27: #{tpu_custom_call.1} parent=1 // pred_check_branch
      %1170 = sbr.rel (0) target = $region29
    $region28: #{tpu_custom_call.1} parent=1 // pred_region
      %1171 = dma.done [#allocation3], 64
    $region29: #{tpu_custom_call.1} parent=1 // pred_fallthru
      _
    %1172 = vsyncpa [#allocation3], 1

</llo_original>
